<compile_context>
chip_gen: v6e
topology: v6e:2x2x1
jax: 0.10.0
libtpu: 0.0.40
codegen_flags: <defaults>
</compile_context>

<pallas_src>
import math

import jax
import jax.numpy as jnp
from jax import lax
from jax.experimental import pallas as pl
from jax.experimental.pallas import tpu as pltpu

_LANES = 128
_SUBLANES = 8
_TARGET_TILE_BYTES = 4 * 1024 * 1024  # per input, per pipeline buffer


def _round_up(x, m):
    return ((x + m - 1) // m) * m


def _default_core_splits():
    """2 grid splits on dual-TensorCore chips (v4/v5p/v7x), else 1."""
    try:
        kind = jax.devices()[0].device_kind.lower()
    except Exception:
        return 1
    if any(t in kind for t in ("v5 lite", "v5e", "v6 lite", "v6e")):
        return 1
    if any(t in kind for t in ("v4", "v5p", "v5 p", "v7", "7x")):
        return 2
    return 1


def _pinn0_forward(u, xt, *, tile_rows=None, core_splits=None):
    """Returns sum(u*u*xt*xt) as a float32 scalar (f32 accumulation)."""
    assert u.shape == xt.shape, "u and xt must have identical shapes"
    total = int(math.prod(u.shape))
    acc_dt = jnp.float32

    u_flat = jnp.ravel(u)    # free reshape of a contiguous array; native dtype
    xt_flat = jnp.ravel(xt)

    aligned = (total // _LANES) * _LANES
    rows = aligned // _LANES

    # Too small to fill a single (8,128) tile: just do it in XLA.
    if rows < _SUBLANES:
        p = u_flat.astype(acc_dt) * xt_flat.astype(acc_dt)
        return jnp.sum(p * p)

    # Sub-128-element ragged tail handled in XLA (avoids a full-array jnp.pad).
    tail = total - aligned
    tail_sum = jnp.zeros((), acc_dt)
    if tail:
        tp = u_flat[aligned:].astype(acc_dt) * xt_flat[aligned:].astype(acc_dt)
        tail_sum = jnp.sum(tp * tp)
        u2 = u_flat[:aligned].reshape(rows, _LANES)
        xt2 = xt_flat[:aligned].reshape(rows, _LANES)
    else:
        u2 = u_flat.reshape(rows, _LANES)     # no copy in the aligned case
        xt2 = xt_flat.reshape(rows, _LANES)

    itemsize = max(jnp.dtype(u.dtype).itemsize, jnp.dtype(xt.dtype).itemsize)
    if tile_rows is None:
        tile_rows = _TARGET_TILE_BYTES // (_LANES * itemsize)  # 8192 f32 / 16384 bf16
    tile_rows = _round_up(max(_SUBLANES, int(tile_rows)), _SUBLANES)
    tile_rows = min(tile_rows, (rows // _SUBLANES) * _SUBLANES)

    num_blocks = -(-rows // tile_rows)

    if core_splits is None:
        core_splits = _default_core_splits()
    core_splits = max(1, min(int(core_splits), num_blocks))
    steps = -(-num_blocks // core_splits)
    grid_blocks = core_splits * steps

    # Boundary blocks (partial last block, or duplicated blocks when the grid
    # over-runs num_blocks) are masked in-kernel instead of padding in HBM.
    needs_mask = grid_blocks * tile_rows > rows
    last_block = num_blocks - 1

    def in_map(p, s):
        b = p * steps + s
        if grid_blocks != num_blocks:       # static check; clamp duplicate blocks
            b = jnp.minimum(b, last_block)
        return (b, 0)

    def kernel(u_ref, xt_ref, o_ref):
        s = pl.program_id(1)

        # Zero this split's resident vector accumulator on its first step.
        @pl.when(s == 0)
        def _():
            o_ref[...] = jnp.zeros_like(o_ref)

        uu = u_ref[...].astype(acc_dt)
        xx = xt_ref[...].astype(acc_dt)
        prod = uu * xx                      # u*u*xt*xt == (u*xt)**2 elementwise
        sq = prod * prod

        if needs_mask:
            b = pl.program_id(0) * steps + s
            rows_valid = rows - b * tile_rows          # may be <= 0 (dup block)
            row_idx = lax.broadcasted_iota(jnp.int32, sq.shape, 0)
            sq = jnp.where(row_idx < rows_valid, sq, 0.0)

        # Fold to (tile_rows//8, 8, 128) and reduce the leading axis: pure vreg
        # adds on the VPU, no per-step cross-lane/sublane (XLU) work.
        partial_sum = jnp.sum(
            sq.reshape(tile_rows // _SUBLANES, _SUBLANES, _LANES), axis=0)
        o_ref[...] += partial_sum[None]

    tile_bytes = tile_rows * _LANES * itemsize
    vmem_limit = max(32 * 1024 * 1024, 4 * tile_bytes + (4 << 20))

    out = pl.pallas_call(
        kernel,
        out_shape=jax.ShapeDtypeStruct((core_splits, _SUBLANES, _LANES), acc_dt),
        grid_spec=pltpu.PrefetchScalarGridSpec(
            num_scalar_prefetch=0,
            grid=(core_splits, steps),
            in_specs=[
                pl.BlockSpec((tile_rows, _LANES), in_map),
                pl.BlockSpec((tile_rows, _LANES), in_map),
            ],
            out_specs=pl.BlockSpec((1, _SUBLANES, _LANES), lambda p, s: (p, 0, 0)),
        ),
        compiler_params=pltpu.CompilerParams(
            dimension_semantics=("parallel", "arbitrary"),
            vmem_limit_bytes=vmem_limit,
        ),
        cost_estimate=pl.CostEstimate(
            flops=3 * aligned,
            transcendentals=0,
            bytes_accessed=2 * aligned * itemsize
            + core_splits * _SUBLANES * _LANES * 4,
        ),
    )(u2, xt2)

    # Tiny final reduce (core_splits * 8 * 128 f32 values) in plain XLA.
    return jnp.sum(out) + tail_sum


pinn0_forward = jax.jit(_pinn0_forward, static_argnames=("tile_rows", "core_splits"))


if __name__ == "__main__":
    key = jax.random.PRNGKey(0)
    k = jax.random.split(key, 8)

    # 1) Primary check: PINN-style f32, size a multiple of 128 (zero-copy path).
    u = jax.random.normal(k[0], (2, 4, 16, 16), dtype=jnp.float32)
    xt = jax.random.normal(k[1], (2, 4, 16, 16), dtype=jnp.float32)
    res = jax.block_until_ready(pinn0_forward(u, xt))
    ref = jnp.sum(u * u * xt * xt)
    assert jnp.allclose(res, ref, rtol=1e-5, atol=1e-5), (res, ref)

    # 2) Ragged size + bf16: exercises the in-kernel row mask and the XLA tail.
    ub = jax.random.normal(k[2], (3, 5, 7, 13), dtype=jnp.bfloat16)
    xtb = jax.random.normal(k[3], (3, 5, 7, 13), dtype=jnp.bfloat16)
    res_b = jax.block_until_ready(pinn0_forward(ub, xtb))
    pb = ub.astype(jnp.float32) * xtb.astype(jnp.float32)
    ref_b = jnp.sum(pb * pb)
    assert jnp.allclose(res_b, ref_b, rtol=2e-2, atol=2e-2), (res_b, ref_b)

    # 3) Forced multi-block grid with 2 splits: 13 blocks over a (2, 7) grid, so
    #    it exercises the partial last block AND the clamped duplicate block.
    uc = jax.random.normal(k[4], (100, 128), dtype=jnp.float32)
    xtc = jax.random.normal(k[5], (100, 128), dtype=jnp.float32)
    res_c = jax.block_until_ready(pinn0_forward(uc, xtc, tile_rows=8, core_splits=2))
    ref_c = jnp.sum(uc * uc * xtc * xtc)
    assert jnp.allclose(res_c, ref_c, rtol=1e-5, atol=1e-5), (res_c, ref_c)

    # 4) Larger aligned input: multi-step resident-accumulator path with the
    #    default (big) tile size.
    ud = jax.random.normal(k[6], (16, 1024, 128), dtype=jnp.float32)
    xtd = jax.random.normal(k[7], (16, 1024, 128), dtype=jnp.float32)
    res_d = jax.block_until_ready(pinn0_forward(ud, xtd))
    ref_d = jnp.sum(ud * ud * xtd * xtd)
    assert jnp.allclose(res_d, ref_d, rtol=1e-4, atol=1.0), (res_d, ref_d)

    print("KERNEL_OK")
</pallas_src>

<mosaic_0001>
module attributes {stable_mosaic.version = 11 : i64} {
  func.func @kernel(%arg0: i32, %arg1: i32, %arg2: memref<16x128xf32, #tpu.memory_space<vmem>>, %arg3: memref<16x128xf32, #tpu.memory_space<vmem>>, %arg4: memref<1x8x128xf32, #tpu.memory_space<vmem>>) attributes {dimension_semantics = [#tpu.dimension_semantics<parallel>, #tpu.dimension_semantics<arbitrary>], iteration_bounds = array<i64: 1, 1>, scalar_prefetch = 0 : i64, scratch_operands = 0 : i64, tpu.core_type = #tpu.core_type<tc>, window_params = [{transform_indices = @transform_0, window_bounds = array<i64: 16, 128>}, {transform_indices = @transform_1, window_bounds = array<i64: 16, 128>}, {transform_indices = @transform_2, window_bounds = array<i64: 1, 8, 128>}]} {
    %c0_i32 = arith.constant 0 : i32
    %0 = arith.cmpi eq, %arg1, %c0_i32 : i32
    %1 = arith.extui %0 : i1 to i32
    %c0_i32_0 = arith.constant 0 : i32
    %2 = arith.cmpi ne, %1, %c0_i32_0 : i32
    scf.if %2 {
      %cst_10 = arith.constant 0.000000e+00 : f32
      %13 = vector.broadcast %cst_10 : f32 to vector<1x8x128xf32>
      %c0_11 = arith.constant 0 : index
      %c0_12 = arith.constant 0 : index
      %c0_13 = arith.constant 0 : index
      %14 = vector.load %arg4[%c0_11, %c0_12, %c0_13] : memref<1x8x128xf32, #tpu.memory_space<vmem>>, vector<1x8x128xf32>
      tpu.vector_store %arg4[%c0_11, %c0_12, %c0_13], %13 {strides = array<i32>} : memref<1x8x128xf32, #tpu.memory_space<vmem>>, vector<1x8x128xf32>,
    } else {
    }
    %c0 = arith.constant 0 : index
    %c0_1 = arith.constant 0 : index
    %3 = vector.load %arg2[%c0, %c0_1] : memref<16x128xf32, #tpu.memory_space<vmem>>, vector<16x128xf32>
    %c0_2 = arith.constant 0 : index
    %c0_3 = arith.constant 0 : index
    %4 = vector.load %arg3[%c0_2, %c0_3] : memref<16x128xf32, #tpu.memory_space<vmem>>, vector<16x128xf32>
    %5 = arith.mulf %3, %4 : vector<16x128xf32>
    %6 = arith.mulf %5, %5 : vector<16x128xf32>
    %7 = vector.shape_cast %6 : vector<16x128xf32> to vector<2x8x128xf32>
    %cst = arith.constant dense<0.000000e+00> : vector<8x128xf32>
    %8 = vector.multi_reduction <add>, %7, %cst [0] : vector<2x8x128xf32> to vector<8x128xf32>
    %c0_4 = arith.constant 0 : index
    %c0_5 = arith.constant 0 : index
    %c0_6 = arith.constant 0 : index
    %9 = vector.load %arg4[%c0_4, %c0_5, %c0_6] : memref<1x8x128xf32, #tpu.memory_space<vmem>>, vector<1x8x128xf32>
    %10 = vector.shape_cast %8 : vector<8x128xf32> to vector<1x8x128xf32>
    %11 = arith.addf %9, %10 : vector<1x8x128xf32>
    %c0_7 = arith.constant 0 : index
    %c0_8 = arith.constant 0 : index
    %c0_9 = arith.constant 0 : index
    %12 = vector.load %arg4[%c0_7, %c0_8, %c0_9] : memref<1x8x128xf32, #tpu.memory_space<vmem>>, vector<1x8x128xf32>
    tpu.vector_store %arg4[%c0_7, %c0_8, %c0_9], %11 {strides = array<i32>} : memref<1x8x128xf32, #tpu.memory_space<vmem>>, vector<1x8x128xf32>,
    return
  }
  func.func @transform_0(%arg0: i32, %arg1: i32) -> (i32, i32) {
    %c1_i32 = arith.constant 1 : i32
    %0 = arith.muli %arg0, %c1_i32 : i32
    %1 = arith.addi %0, %arg1 : i32
    %c0_i32 = arith.constant 0 : i32
    %c0_i32_0 = arith.constant 0 : i32
    return %1, %c0_i32 : i32, i32
  }
  func.func @transform_1(%arg0: i32, %arg1: i32) -> (i32, i32) {
    %c1_i32 = arith.constant 1 : i32
    %0 = arith.muli %arg0, %c1_i32 : i32
    %1 = arith.addi %0, %arg1 : i32
    %c0_i32 = arith.constant 0 : i32
    %c0_i32_0 = arith.constant 0 : i32
    return %1, %c0_i32 : i32, i32
  }
  func.func @transform_2(%arg0: i32, %arg1: i32) -> (i32, i32, i32) {
    %c0_i32 = arith.constant 0 : i32
    %c0_i32_0 = arith.constant 0 : i32
    %c0_i32_1 = arith.constant 0 : i32
    return %arg0, %c0_i32, %c0_i32_0 : i32, i32, i32
  }
}

</mosaic_0001>

<llo_original>
// kernel: _pinn0_forward.1
$region0: #{_pinn0_forward.1}
  #allocation0 [shape = 'u32[]', space=smem, size = 0x4, offset = 0x4, fixed_abs, tag = 'smem constant byte address 0x4 - core index']
  #allocation1 [shape = 'u32[144,128]{1,0:T(1,128)}', space=vmem, size = 0x12000, scoped, tag = 'internal scratch']
  %s0 = inlined_call_operand.vmem [shape: f32[16,128], index: 0, kind: input, shape index: {}]
  %s1 = inlined_call_operand.vmem [shape: f32[16,128], index: 1, kind: input, shape index: {}]
  %s2 = inlined_call_operand.vmem [shape: f32[1,8,128], index: 2, kind: output, shape index: {}]
  %s3 = sld [smem:[#allocation0]]
  $region22: #{_pinn0_forward.1} parent=0
    _
  %s5 = ssub.s32 1, %s3
  %s6 = scalar_select 0, %s5, %s3
  // Predicated region
  $region2: #{_pinn0_forward.1} parent=0 // pred_check
    _
  $region3: #{_pinn0_forward.1} parent=0 // pred_check_branch
    %8 = sbr.rel (0) target = $region5
  $region4: #{_pinn0_forward.1} parent=0 // pred_region
    %s9 = sadd.s32 0, 0
    %s10 = smul.u32 2, %s9
    %p11 = scmp.lt.s32.totalorder %s10, 1
    %s12 = scalar_select %p11, %s10, 1
    %s13 = smul.addr %s12, 8
    %s14 = scalar_lea.vmem %s0, %s13
    %s15 = sadd.s32 0, 0
    %s16 = smul.u32 2, %s15
  $region5: #{_pinn0_forward.1} parent=0 // pred_fallthru
    _
  // Predicated region
  $region6: #{_pinn0_forward.1} parent=0 // pred_check
    _
  $region7: #{_pinn0_forward.1} parent=0 // pred_check_branch
    %18 = sbr.rel (0) target = $region9
  $region8: #{_pinn0_forward.1} parent=0 // pred_region
    %s19 = sadd.s32 0, 0
    %s20 = smul.u32 2, %s19
    %p21 = scmp.lt.s32.totalorder %s20, 1
    %s22 = scalar_select %p21, %s20, 1
    %s23 = smul.addr %s22, 8
    %s24 = scalar_lea.vmem %s1, %s23
    %s25 = sadd.s32 0, 0
    %s26 = smul.u32 2, %s25
  $region9: #{_pinn0_forward.1} parent=0 // pred_fallthru
    _
  %s27 = sadd.s32 0, 0
  %s28 = smul.u32 2, %s27
  %p29 = scmp.lt.s32.totalorder %s28, 1
  %s30 = scalar_select %p29, %s28, 1
  %s31 = smul.addr %s30, 8
  %s32 = scalar_lea.vmem %s0, %s31
  %s33 = sadd.s32 0, 0
  %s34 = smul.u32 2, %s33
  %p35 = scmp.lt.s32.totalorder %s34, 1
  %s36 = scalar_select %p35, %s34, 1
  %s37 = smul.addr %s36, 8
  %s38 = scalar_lea.vmem %s1, %s37
  %s39 = sadd.s32 0, 0
  %s40 = smul.u32 2, %s39
  %p41 = scmp.lt.s32.totalorder %s40, 1
  %s42 = scalar_select %p41, %s40, 1
  %s43 = smul.addr %s42, 8
  %s44 = scalar_lea.vmem %s0, %s43
  %s45 = sadd.s32 0, 0
  %s46 = smul.u32 2, %s45
  %s47 = sadd.s32 0, 0
  %s48 = smul.u32 2, %s47
  %p49 = scmp.lt.s32.totalorder %s48, 1
  %s50 = scalar_select %p49, %s48, 1
  %s51 = smul.addr %s50, 8
  %s52 = scalar_lea.vmem %s1, %s51
  %s53 = sadd.s32 0, 0
  %s54 = smul.u32 2, %s53
  %p55 = scmp.eq.s32.totalorder 0, 0
  // Predicated region
  $region10: #{_pinn0_forward.1} parent=0 // pred_check
    %p56 = pneg %p55
  $region11: #{_pinn0_forward.1} parent=0 // pred_check_branch
    %58 = sbr.rel (%p56) target = $region13
  $region12: #{_pinn0_forward.1} parent=0 // pred_region
    %59 = vst [vmem:[%s2] sm:$0xff] 0.0
  $region13: #{_pinn0_forward.1} parent=0 // pred_fallthru
    _
  %v60 = vld [vmem:[%s44] sm:$0xff]
  %v61 = vld [vmem:[%s44 + $0x8] sm:$0xff]
  %v62 = vld [vmem:[%s52] sm:$0xff]
  %v63 = vld [vmem:[%s52 + $0x8] sm:$0xff]
  %v64 = vmul.f32 %v60, %v62
  %v65 = vmul.f32 %v61, %v63
  %v66 = vmul.f32 %v64, %v64
  %v67 = vmul.f32 %v65, %v65
  %v68 = vadd.f32 %v66, %v67
  %v69 = vld [vmem:[%s2] sm:$0xff]
  %v70 = vadd.f32 %v69, %v68
  %71 = vst [vmem:[%s2] sm:$0xff] %v70
  // Predicated region
  $region14: #{_pinn0_forward.1} parent=0 // pred_check
    _
  $region15: #{_pinn0_forward.1} parent=0 // pred_check_branch
    %73 = sbr.rel (0) target = $region17
  $region16: #{_pinn0_forward.1} parent=0 // pred_region
    _
  $region17: #{_pinn0_forward.1} parent=0 // pred_fallthru
    _
  // Predicated region
  $region18: #{_pinn0_forward.1} parent=0 // pred_check
    _
  $region19: #{_pinn0_forward.1} parent=0 // pred_check_branch
    %75 = sbr.rel (0) target = $region21
  $region20: #{_pinn0_forward.1} parent=0 // pred_region
    _
  $region21: #{_pinn0_forward.1} parent=0 // pred_fallthru
    _

</llo_original>
